<compile_context>
chip_gen: v7x
topology: tpu7x:2x2x1
jax: 0.10.0
libtpu: 0.0.40
codegen_flags: <defaults>
</compile_context>

<pallas_src>
import functools

import jax
import jax.numpy as jnp
from jax import lax
from jax.experimental import pallas as pl
from jax.experimental.pallas import tpu as pltpu


# Explicit scoped-VMEM budget: above v5e's 16 MiB default, below v7x's 64 MiB physical.
_VMEM_LIMIT_BYTES = 48 * 1024 * 1024


def _round_up(x, m):
    return ((x + m - 1) // m) * m


def _compiler_params(dim_sem):
    return pltpu.CompilerParams(dimension_semantics=dim_sem,
                                vmem_limit_bytes=_VMEM_LIMIT_BYTES)


# -----------------------------------------------------------------------------
# Optional single-buffering for grid-invariant (weight/bias) operands.
# Their index_map is constant, so double-buffering them is pure VMEM waste
# (matters most on v7x with 64 MiB VMEM).  Probe once; fall back cleanly.
# -----------------------------------------------------------------------------
def _probe_buffered():
    if not hasattr(pl, "Buffered"):
        return False
    try:
        def k(x_ref, o_ref):
            o_ref[...] = x_ref[...]

        x = jnp.ones((8, 128), jnp.float32)
        out = pl.pallas_call(
            k,
            out_shape=jax.ShapeDtypeStruct((8, 128), jnp.float32),
            grid=(1,),
            in_specs=[pl.BlockSpec((8, 128), lambda i: (0, 0),
                                   pipeline_mode=pl.Buffered(1))],
            out_specs=pl.BlockSpec((8, 128), lambda i: (0, 0)),
        )(x)
        return bool(jnp.all(out == x))
    except Exception:
        return False


_HAS_BUFFERED = _probe_buffered()


def _resident_spec(shape, index_map):
    """BlockSpec for an operand that is identical for every grid step."""
    if _HAS_BUFFERED:
        return pl.BlockSpec(shape, index_map, pipeline_mode=pl.Buffered(1))
    return pl.BlockSpec(shape, index_map)


# -----------------------------------------------------------------------------
# Pallas kernels
# -----------------------------------------------------------------------------
def _linear_kernel(x_ref, w_ref, b_ref, o_ref, *, in_act, out_act):
    """(optional SiLU on input) -> bf16 matmul (f32 acc) -> +bias -> out-act."""
    x = x_ref[...]                                   # bf16
    if in_act == "silu":
        xf = x.astype(jnp.float32)
        x = (xf * (1.0 / (1.0 + jnp.exp(-xf)))).astype(jnp.bfloat16)
    y = jnp.dot(x, w_ref[...], preferred_element_type=jnp.float32)
    y = y + b_ref[...]                               # f32
    if out_act == "relu":
        y = jnp.maximum(y, 0.0)
    elif out_act == "silu":
        y = y * (1.0 / (1.0 + jnp.exp(-y)))
    elif out_act == "log_softmax":
        m = jnp.max(y, axis=-1, keepdims=True)
        e = jnp.exp(y - m)
        y = (y - m) - jnp.log(jnp.sum(e, axis=-1, keepdims=True))
    o_ref[...] = y.astype(o_ref.dtype)


def _ln_linear_kernel(x_ref, g_ref, b_ref, w_ref, bias_ref, o_ref, *, eps, out_act):
    """Fused LayerNorm (f32 stats over full D) -> bf16 matmul -> +bias -> act."""
    x = x_ref[...]                                   # f32 (tm, D)
    mu = jnp.mean(x, axis=-1, keepdims=True)
    var = jnp.mean(jnp.square(x - mu), axis=-1, keepdims=True)
    h = (x - mu) * lax.rsqrt(var + eps) * g_ref[...] + b_ref[...]
    y = jnp.dot(h.astype(jnp.bfloat16), w_ref[...],
                preferred_element_type=jnp.float32) + bias_ref[...]
    if out_act == "silu":
        y = y * (1.0 / (1.0 + jnp.exp(-y)))
    o_ref[...] = y.astype(o_ref.dtype)


def _linear2_kernel(x_ref, w1_ref, b1_ref, w2_ref, b2_ref, o_ref):
    """Two chained Linears in one kernel (no HBM round trip in between)."""
    h = jnp.dot(x_ref[...], w1_ref[...], preferred_element_type=jnp.float32)
    h = (h + b1_ref[...]).astype(jnp.bfloat16)
    y = jnp.dot(h, w2_ref[...], preferred_element_type=jnp.float32) + b2_ref[...]
    o_ref[...] = y.astype(o_ref.dtype)


def _flash_attn_kernel(q_ref, kt_ref, v_ref, o_ref, m_sc, l_sc, acc_sc, *,
                       scale, t_real, tk, mask_kv):
    """Flash-style attention tile: online softmax over kv tiles (f32 stats)."""
    kv = pl.program_id(2)

    @pl.when(kv == 0)
    def _():
        m_sc[...] = jnp.full_like(m_sc, -jnp.inf)
        l_sc[...] = jnp.zeros_like(l_sc)
        acc_sc[...] = jnp.zeros_like(acc_sc)

    q = q_ref[0]                                      # (tq, D)  bf16
    kt = kt_ref[0]                                    # (D, tk)  bf16 (K pre-transposed)
    v = v_ref[0]                                      # (tk, D)  bf16

    s = jnp.dot(q, kt, preferred_element_type=jnp.float32) * scale   # f32 (tq, tk)
    if mask_kv:
        col = kv * tk + lax.broadcasted_iota(jnp.int32, s.shape, 1)
        s = jnp.where(col < t_real, s, -jnp.inf)

    m_prev = m_sc[...]
    m_new = jnp.maximum(m_prev, jnp.max(s, axis=-1, keepdims=True))
    alpha = jnp.exp(m_prev - m_new)
    p = jnp.exp(s - m_new)
    l_sc[...] = alpha * l_sc[...] + jnp.sum(p, axis=-1, keepdims=True)
    acc_sc[...] = alpha * acc_sc[...] + jnp.dot(
        p.astype(jnp.bfloat16), v, preferred_element_type=jnp.float32)
    m_sc[...] = m_new

    @pl.when(kv == pl.num_programs(2) - 1)
    def _():
        o_ref[0] = (acc_sc[...] * pl.reciprocal(l_sc[...], approx=True)
                    ).astype(o_ref.dtype)


# -----------------------------------------------------------------------------
# Pallas wrappers
# -----------------------------------------------------------------------------
def pallas_linear(x, w, b, in_act="none", out_act="none"):
    """x:(M,K) @ w:(K,N) + b:(N,).  Operands cast to bf16, f32 accumulation."""
    M, K = x.shape
    N = w.shape[1]
    tm = min(512, _round_up(M, 8))
    Mp = _round_up(M, tm)
    xb = x.astype(jnp.bfloat16)
    if Mp != M:
        xb = jnp.pad(xb, ((0, Mp - M), (0, 0)))

    out = pl.pallas_call(
        functools.partial(_linear_kernel, in_act=in_act, out_act=out_act),
        out_shape=jax.ShapeDtypeStruct((Mp, N), jnp.float32),
        grid_spec=pltpu.PrefetchScalarGridSpec(
            num_scalar_prefetch=0,
            grid=(Mp // tm,),
            in_specs=[
                pl.BlockSpec((tm, K), lambda i: (i, 0)),
                _resident_spec((K, N), lambda i: (0, 0)),
                _resident_spec((1, N), lambda i: (0, 0)),
            ],
            out_specs=pl.BlockSpec((tm, N), lambda i: (i, 0)),
        ),
        compiler_params=_compiler_params(("parallel",)),
    )(xb, w.astype(jnp.bfloat16), b.reshape(1, N).astype(jnp.float32))
    return out[:M]


def pallas_ln_linear(x, g, b, w, bias, out_act="none", eps=1e-5):
    """Fused LayerNorm(x) @ w + bias.  x stays f32 (LN stats), w is bf16."""
    M, K = x.shape
    N = w.shape[1]
    tm = min(512, _round_up(M, 8))
    Mp = _round_up(M, tm)
    xp = jnp.pad(x, ((0, Mp - M), (0, 0))) if Mp != M else x

    out = pl.pallas_call(
        functools.partial(_ln_linear_kernel, eps=eps, out_act=out_act),
        out_shape=jax.ShapeDtypeStruct((Mp, N), jnp.float32),
        grid_spec=pltpu.PrefetchScalarGridSpec(
            num_scalar_prefetch=0,
            grid=(Mp // tm,),
            in_specs=[
                pl.BlockSpec((tm, K), lambda i: (i, 0)),
                _resident_spec((1, K), lambda i: (0, 0)),
                _resident_spec((1, K), lambda i: (0, 0)),
                _resident_spec((K, N), lambda i: (0, 0)),
                _resident_spec((1, N), lambda i: (0, 0)),
            ],
            out_specs=pl.BlockSpec((tm, N), lambda i: (i, 0)),
        ),
        compiler_params=_compiler_params(("parallel",)),
    )(xp, g.reshape(1, K), b.reshape(1, K),
      w.astype(jnp.bfloat16), bias.reshape(1, N).astype(jnp.float32))
    return out[:M]


def pallas_linear2(x, w1, b1, w2, b2):
    """Fused (x @ w1 + b1) @ w2 + b2 (no nonlinearity in between)."""
    M, K1 = x.shape
    N1 = w1.shape[1]
    N2 = w2.shape[1]
    tm = min(512, _round_up(M, 8))
    Mp = _round_up(M, tm)
    xb = x.astype(jnp.bfloat16)
    if Mp != M:
        xb = jnp.pad(xb, ((0, Mp - M), (0, 0)))

    out = pl.pallas_call(
        _linear2_kernel,
        out_shape=jax.ShapeDtypeStruct((Mp, N2), jnp.float32),
        grid_spec=pltpu.PrefetchScalarGridSpec(
            num_scalar_prefetch=0,
            grid=(Mp // tm,),
            in_specs=[
                pl.BlockSpec((tm, K1), lambda i: (i, 0)),
                _resident_spec((K1, N1), lambda i: (0, 0)),
                _resident_spec((1, N1), lambda i: (0, 0)),
                _resident_spec((N1, N2), lambda i: (0, 0)),
                _resident_spec((1, N2), lambda i: (0, 0)),
            ],
            out_specs=pl.BlockSpec((tm, N2), lambda i: (i, 0)),
        ),
        compiler_params=_compiler_params(("parallel",)),
    )(xb, w1.astype(jnp.bfloat16), b1.reshape(1, N1).astype(jnp.float32),
      w2.astype(jnp.bfloat16), b2.reshape(1, N2).astype(jnp.float32))
    return out[:M]


def pallas_attention(q, k, v):
    """q, k, v: (B*H, T, Dh) f32 -> (B*H, T, Dh) f32.  Flash-style kernel."""
    BH, T, D = q.shape
    scale = 1.0 / float(D ** 0.5)
    tile = min(128, _round_up(T, 8))
    Tp = _round_up(T, tile)

    def padt(t):
        return jnp.pad(t, ((0, 0), (0, Tp - T), (0, 0))) if Tp != T else t

    qb = padt(q).astype(jnp.bfloat16)
    kb = padt(k).astype(jnp.bfloat16)
    vb = padt(v).astype(jnp.bfloat16)
    kt = jnp.swapaxes(kb, 1, 2)                       # (BH, D, Tp): MXU-native q @ k^T

    nq = Tp // tile
    nk = Tp // tile
    out = pl.pallas_call(
        functools.partial(_flash_attn_kernel, scale=scale, t_real=T, tk=tile,
                          mask_kv=(Tp != T)),
        out_shape=jax.ShapeDtypeStruct((BH, Tp, D), jnp.float32),
        grid_spec=pltpu.PrefetchScalarGridSpec(
            num_scalar_prefetch=0,
            grid=(BH, nq, nk),
            in_specs=[
                pl.BlockSpec((1, tile, D), lambda b, qi, ki: (b, qi, 0)),
                pl.BlockSpec((1, D, tile), lambda b, qi, ki: (b, 0, ki)),
                pl.BlockSpec((1, tile, D), lambda b, qi, ki: (b, ki, 0)),
            ],
            out_specs=pl.BlockSpec((1, tile, D), lambda b, qi, ki: (b, qi, 0)),
            scratch_shapes=[
                pltpu.VMEM((tile, 1), jnp.float32),   # running max
                pltpu.VMEM((tile, 1), jnp.float32),   # running denom
                pltpu.VMEM((tile, D), jnp.float32),   # output accumulator
            ],
        ),
        compiler_params=_compiler_params(("parallel", "parallel", "arbitrary")),
    )(qb, kt, vb)
    return out[:, :T, :]


# -----------------------------------------------------------------------------
# Model pieces (plain-JAX glue around the Pallas kernels)
# -----------------------------------------------------------------------------
def conv2d_relu_via_pallas(x_nhwc, w, b, stride=2, pad=1):
    """x: (B, H, W, C_in) NHWC, w: (C_out, C_in, 3, 3) -> (B, Ho, Wo, C_out), ReLU fused."""
    B, H, W, C = x_nhwc.shape
    Cout = w.shape[0]
    xp = jnp.pad(x_nhwc, ((0, 0), (pad, pad), (pad, pad), (0, 0)))
    Ho = (H + 2 * pad - 3) // stride + 1
    Wo = (W + 2 * pad - 3) // stride + 1
    patches = []
    for kh in range(3):
        for kw in range(3):
            patches.append(
                xp[:, kh:kh + stride * Ho:stride, kw:kw + stride * Wo:stride, :])
    p = jnp.stack(patches, axis=-1)                       # (B, Ho, Wo, C, 9)
    p = p.reshape(B * Ho * Wo, C * 9)                     # columns: (C_in, kh, kw)
    wm = w.reshape(Cout, C * 9).T                         # (C*9, C_out)
    K = C * 9
    if K < 128:                                           # conv1: K=9 -> lane-align to 128
        p = jnp.pad(p, ((0, 0), (0, 128 - K)))
        wm = jnp.pad(wm, ((0, 128 - K), (0, 0)))
    y = pallas_linear(p, wm, b, out_act="relu")
    return y.reshape(B, Ho, Wo, Cout)                     # stay channels-last (lane-dense)


def _calc_length(length):
    # Conv2d(kernel=3, stride=2, padding=1) time subsampling.
    return (length + 2 * 1 - 3) // 2 + 1


def conformer_stub_layer(x, p, num_heads):
    # TODO(synk): exact `pretrained_conformer` architecture is external to the
    # module; a representative single self-attention + SiLU-FFN encoder layer
    # (with LN fused into the QKV / FFN projection kernels) stands in here.
    B, T, D = x.shape
    Dh = D // num_heads
    x2 = x.reshape(B * T, D)

    # LayerNorm + fused QKV projection in one kernel.
    qkv = pallas_ln_linear(x2, p["ln1_g"], p["ln1_b"], p["wqkv"], p["bqkv"])
    q, k, v = jnp.split(qkv, 3, axis=-1)

    def split_heads(t):
        return t.reshape(B, T, num_heads, Dh).transpose(0, 2, 1, 3).reshape(
            B * num_heads, T, Dh)

    a = pallas_attention(split_heads(q), split_heads(k), split_heads(v))
    a = a.reshape(B, num_heads, T, Dh).transpose(0, 2, 1, 3).reshape(B * T, D)
    o = pallas_linear(a, p["wo"], p["bo"]).reshape(B, T, D)
    x = x + o

    # LayerNorm + FFN-1 (SiLU) fused, then FFN-2.
    f = pallas_ln_linear(x.reshape(B * T, D), p["ln2_g"], p["ln2_b"],
                         p["ffn_w1"], p["ffn_b1"], out_act="silu")
    f = pallas_linear(f, p["ffn_w2"], p["ffn_b2"]).reshape(B, T, D)
    return x + f


def conformer_model_forward(params, input_values, length, num_heads=4):
    """input_values: (B, T, F) f32, length: (B,) int32 -> (log_probs, length)."""
    # 1) AdaptiveSpecAugment: identity at inference time.
    # TODO(synk): training-time random freq/time masking not reproduced.
    out = input_values
    B, T, F = out.shape

    # 2) ConvSubsampling: two stride-2 Conv2d+ReLU, channels-last throughout.
    h = out[:, :, :, None]                                    # (B, T, F, 1) NHWC
    h = conv2d_relu_via_pallas(h, params["conv1_w"], params["conv1_b"])
    h = conv2d_relu_via_pallas(h, params["conv2_w"], params["conv2_b"])
    _, Tq, Fq, C = h.shape
    # Flatten in (F', C) order to stay lane-dense (sub_w rows use the same
    # order; equivalent to PyTorch's (C, F') flatten up to a fixed row permute).
    h = h.reshape(B * Tq, Fq * C)

    # 3) ConvSubsampling.out Linear + input_projection Linear fused
    #    (Dropout(0.1) is identity at eval time).
    h = pallas_linear2(h, params["sub_w"], params["sub_b"],
                       params["inproj_w"], params["inproj_b"])
    length = _calc_length(_calc_length(length))

    D = params["inproj_w"].shape[1]
    h = h.reshape(B, Tq, D)

    # 4) conformer encoder (stand-in single block); attention_mask=None ignored.
    h = conformer_stub_layer(h, params, num_heads)

    # 5) output_projection (SiLU -> Linear) fused with LogSoftmax(-1).
    #    Vocab padded to a lane multiple; padded logits get bias -1e9 so they
    #    contribute ~0 to the softmax sum, then sliced off.
    V = params["out_w"].shape[1]
    Vp = _round_up(V, 128)
    out_w = jnp.pad(params["out_w"], ((0, 0), (0, Vp - V)))
    out_b = jnp.pad(params["out_b"], ((0, Vp - V),), constant_values=-1e9)
    logp = pallas_linear(h.reshape(B * Tq, D), out_w, out_b,
                         in_act="silu", out_act="log_softmax")[:, :V]
    return logp.reshape(B, Tq, V), length


# -----------------------------------------------------------------------------
# Deterministic parameter init (shapes from ConformerModel.__init__)
# -----------------------------------------------------------------------------
def init_params(key, input_dim, vocab_size,
                feat_extract_dim=512, conv_channels=256, conformer_dim=1024):
    def nrm(k, shape, scale=0.02):
        return scale * jax.random.normal(k, shape, dtype=jnp.float32)

    keys = jax.random.split(key, 16)
    f_after = _calc_length(_calc_length(input_dim))
    p = {
        # ConvSubsampling
        "conv1_w": nrm(keys[0], (conv_channels, 1, 3, 3)),
        "conv1_b": jnp.zeros((conv_channels,), jnp.float32),
        "conv2_w": nrm(keys[1], (conv_channels, conv_channels, 3, 3)),
        "conv2_b": jnp.zeros((conv_channels,), jnp.float32),
        "sub_w": nrm(keys[2], (conv_channels * f_after, feat_extract_dim)),
        "sub_b": jnp.zeros((feat_extract_dim,), jnp.float32),
        # input_projection
        "inproj_w": nrm(keys[3], (feat_extract_dim, conformer_dim)),
        "inproj_b": jnp.zeros((conformer_dim,), jnp.float32),
        # conformer stub layer (fused QKV)
        "ln1_g": jnp.ones((conformer_dim,), jnp.float32),
        "ln1_b": jnp.zeros((conformer_dim,), jnp.float32),
        "wqkv": nrm(keys[4], (conformer_dim, 3 * conformer_dim)),
        "bqkv": jnp.zeros((3 * conformer_dim,), jnp.float32),
        "wo": nrm(keys[5], (conformer_dim, conformer_dim)),
        "bo": jnp.zeros((conformer_dim,), jnp.float32),
        "ln2_g": jnp.ones((conformer_dim,), jnp.float32),
        "ln2_b": jnp.zeros((conformer_dim,), jnp.float32),
        "ffn_w1": nrm(keys[6], (conformer_dim, conformer_dim)),
        "ffn_b1": jnp.zeros((conformer_dim,), jnp.float32),
        "ffn_w2": nrm(keys[7], (conformer_dim, conformer_dim)),
        "ffn_b2": jnp.zeros((conformer_dim,), jnp.float32),
        # output_projection
        "out_w": nrm(keys[8], (conformer_dim, vocab_size)),
        "out_b": jnp.zeros((vocab_size,), jnp.float32),
    }
    return p


# -----------------------------------------------------------------------------
# Demo
# -----------------------------------------------------------------------------
if __name__ == "__main__":
    key = jax.random.PRNGKey(0)
    k_in, k_par = jax.random.split(key)

    B, T, F = 2, 16, 16          # small batch / time / mel-freq
    VOCAB = 32                   # stand-in for text_process.n_class

    input_values = jax.random.normal(k_in, (B, T, F), dtype=jnp.float32)
    length = jnp.array([16, 12], dtype=jnp.int32)

    params = init_params(k_par, input_dim=F, vocab_size=VOCAB)

    log_probs, out_len = conformer_model_forward(params, input_values, length)
    jax.block_until_ready((log_probs, out_len))

    assert log_probs.shape == (B, 4, VOCAB)                       # T//4 frames
    assert jnp.allclose(jnp.exp(log_probs).sum(-1), 1.0, atol=1e-4)
    assert bool(jnp.all(jnp.isfinite(log_probs)))
    print("KERNEL_OK")
</pallas_src>

<mosaic_0001>
module attributes {stable_mosaic.version = 11 : i64} {
  func.func @k(%arg0: i32, %arg1: memref<8x128xf32, #tpu.memory_space<vmem>>, %arg2: memref<8x128xf32, #tpu.memory_space<vmem>>) attributes {dimension_semantics = [#tpu.dimension_semantics<arbitrary>], iteration_bounds = array<i64: 1>, scalar_prefetch = 0 : i64, scratch_operands = 0 : i64, tpu.core_type = #tpu.core_type<tc>, window_params = [{pipeline_mode = #tpu.pipeline_mode<synchronous>, transform_indices = @transform_0, window_bounds = array<i64: 8, 128>}, {pipeline_mode = #tpu.pipeline_mode<synchronous>, transform_indices = @transform_1, window_bounds = array<i64: 8, 128>}]} {
    %c0 = arith.constant 0 : index
    %c0_0 = arith.constant 0 : index
    %0 = vector.load %arg1[%c0, %c0_0] : memref<8x128xf32, #tpu.memory_space<vmem>>, vector<8x128xf32>
    %c0_1 = arith.constant 0 : index
    %c0_2 = arith.constant 0 : index
    %1 = vector.load %arg2[%c0_1, %c0_2] : memref<8x128xf32, #tpu.memory_space<vmem>>, vector<8x128xf32>
    tpu.vector_store %arg2[%c0_1, %c0_2], %0 {strides = array<i32>} : memref<8x128xf32, #tpu.memory_space<vmem>>, vector<8x128xf32>,
    return
  }
  func.func @transform_0(%arg0: i32) -> (i32, i32) {
    %c0_i32 = arith.constant 0 : i32
    %c0_i32_0 = arith.constant 0 : i32
    %c0_i32_1 = arith.constant 0 : i32
    return %c0_i32, %c0_i32_0 : i32, i32
  }
  func.func @transform_1(%arg0: i32) -> (i32, i32) {
    %c0_i32 = arith.constant 0 : i32
    %c0_i32_0 = arith.constant 0 : i32
    %c0_i32_1 = arith.constant 0 : i32
    return %c0_i32, %c0_i32_0 : i32, i32
  }
}

module attributes {stable_mosaic.version = 11 : i64} {
  func.func @_linear_kernel(%arg0: i32, %arg1: memref<128x128xbf16, #tpu.memory_space<vmem>>, %arg2: memref<128x256xbf16, #tpu.memory_space<vmem>>, %arg3: memref<1x256xf32, #tpu.memory_space<vmem>>, %arg4: memref<128x256xf32, #tpu.memory_space<vmem>>) attributes {dimension_semantics = [#tpu.dimension_semantics<parallel>], iteration_bounds = array<i64: 1>, scalar_prefetch = 0 : i64, scratch_operands = 0 : i64, tpu.core_type = #tpu.core_type<tc>, window_params = [{transform_indices = @transform_0, window_bounds = array<i64: 128, 128>}, {pipeline_mode = #tpu.pipeline_mode<synchronous>, transform_indices = @transform_1, window_bounds = array<i64: 128, 256>}, {pipeline_mode = #tpu.pipeline_mode<synchronous>, transform_indices = @transform_2, window_bounds = array<i64: 1, 256>}, {transform_indices = @transform_3, window_bounds = array<i64: 128, 256>}]} {
    %c0 = arith.constant 0 : index
    %c0_0 = arith.constant 0 : index
    %0 = vector.load %arg1[%c0, %c0_0] : memref<128x128xbf16, #tpu.memory_space<vmem>>, vector<128x128xbf16>
    %c0_1 = arith.constant 0 : index
    %c0_2 = arith.constant 0 : index
    %1 = vector.load %arg2[%c0_1, %c0_2] : memref<128x256xbf16, #tpu.memory_space<vmem>>, vector<128x256xbf16>
    %cst = arith.constant dense<0.000000e+00> : vector<128x256xf32>
    %2 = tpu.matmul %0, %1, %cst {dimension_numbers = #tpu.dot_dimension_numbers<[1], [0], [0], [1], [0, 0, 1, 1], [], []>} : vector<128x128xbf16>, vector<128x256xbf16>, vector<128x256xf32> -> vector<128x256xf32>
    %c0_3 = arith.constant 0 : index
    %c0_4 = arith.constant 0 : index
    %3 = vector.load %arg3[%c0_3, %c0_4] : memref<1x256xf32, #tpu.memory_space<vmem>>, vector<1x256xf32>
    %4 = vector.broadcast %3 : vector<1x256xf32> to vector<128x256xf32>
    %5 = arith.addf %2, %4 : vector<128x256xf32>
    %cst_5 = arith.constant 0.000000e+00 : f32
    %6 = vector.broadcast %cst_5 : f32 to vector<128x256xf32>
    %7 = arith.maximumf %5, %6 : vector<128x256xf32>
    %c0_6 = arith.constant 0 : index
    %c0_7 = arith.constant 0 : index
    %8 = vector.load %arg4[%c0_6, %c0_7] : memref<128x256xf32, #tpu.memory_space<vmem>>, vector<128x256xf32>
    tpu.vector_store %arg4[%c0_6, %c0_7], %7 {strides = array<i32>} : memref<128x256xf32, #tpu.memory_space<vmem>>, vector<128x256xf32>,
    return
  }
  func.func @transform_0(%arg0: i32) -> (i32, i32) {
    %c0_i32 = arith.constant 0 : i32
    %c0_i32_0 = arith.constant 0 : i32
    return %arg0, %c0_i32 : i32, i32
  }
  func.func @transform_1(%arg0: i32) -> (i32, i32) {
    %c0_i32 = arith.constant 0 : i32
    %c0_i32_0 = arith.constant 0 : i32
    %c0_i32_1 = arith.constant 0 : i32
    return %c0_i32, %c0_i32_0 : i32, i32
  }
  func.func @transform_2(%arg0: i32) -> (i32, i32) {
    %c0_i32 = arith.constant 0 : i32
    %c0_i32_0 = arith.constant 0 : i32
    %c0_i32_1 = arith.constant 0 : i32
    return %c0_i32, %c0_i32_0 : i32, i32
  }
  func.func @transform_3(%arg0: i32) -> (i32, i32) {
    %c0_i32 = arith.constant 0 : i32
    %c0_i32_0 = arith.constant 0 : i32
    return %arg0, %c0_i32 : i32, i32
  }
}

</mosaic_0001>

<llo_original>
// kernel: tpu_custom_call.1
$region0: #{tpu_custom_call.1}
  #allocation0 [shape = 'u32[]', space=smem, size = 0x4, offset = 0x4, fixed_abs, tag = 'smem constant byte address 0x4 - core index']
  #allocation1 [shape = 'u32[144,128]{1,0:T(1,128)}', space=vmem, size = 0x12000, scoped, tag = 'internal scratch']
  %s0 = inlined_call_operand.hbm [shape: f32[8,128], index: 0, kind: input, shape index: {}]
  %s1 = inlined_call_operand.hbm [shape: f32[8,128], index: 1, kind: output, shape index: {}]
  %s2 = sld [smem:[#allocation0]]
  $region18: #{tpu_custom_call.1} parent=0
    _
  %s4 = ssub.s32 1, %s2
  %s5 = scalar_select 0, %s4, %s2
  $region1: #{tpu_custom_call.1} parent=0
    #allocation2 [shape = 'u8[4096]{0}', space=vmem, size = 0x1000, scoped, tag = 'input window, operand 0, single buffered']
    #allocation3 [shape = 's32[1]{0}', space=sflag, size = 0x4, scoped, tag = 'scoped memory for tpu_custom_call.1']
    #allocation4 [shape = 's32[1]{0}', space=sflag, size = 0x4, scoped, tag = 'scoped memory for tpu_custom_call.1']
    #allocation5 [shape = 'u8[4096]{0}', space=vmem, size = 0x1000, scoped, tag = 'output window, operand 0, single buffered']
    %6 = vsyncpa [#allocation3], 0
    %7 = vsyncpa [#allocation4], 0
    // Predicated region
    $region2: #{tpu_custom_call.1} parent=1 // pred_check
      _
    $region3: #{tpu_custom_call.1} parent=1 // pred_check_branch
      %9 = sbr.rel (0) target = $region5
    $region4: #{tpu_custom_call.1} parent=1 // pred_region
      %s11 = ssub.s32 128, 128
      %12 = vsyncadd [#allocation3], %s11
      %s14 = sshll.u32 [#allocation2], 4
      %s15 = int_to_ptr.vmem [resolvable:$true] %s14
      %17 = dma.hbm_to_vmem [thread:$0]  %s0, 128, %s15, [#allocation3]
    $region5: #{tpu_custom_call.1} parent=1 // pred_fallthru
      _
    // Predicated region
    $region6: #{tpu_custom_call.1} parent=1 // pred_check
      _
    $region7: #{tpu_custom_call.1} parent=1 // pred_check_branch
      %19 = sbr.rel (0) target = $region9
    $region8: #{tpu_custom_call.1} parent=1 // pred_region
      %20 = dma.done [#allocation3], 128
    $region9: #{tpu_custom_call.1} parent=1 // pred_fallthru
      _
    %v21 = vld [vmem:[#allocation2] sm:$0xff]
    %22 = vst [vmem:[#allocation5] sm:$0xff] %v21
    // Predicated region
    $region10: #{tpu_custom_call.1} parent=1 // pred_check
      _
    $region11: #{tpu_custom_call.1} parent=1 // pred_check_branch
      %24 = sbr.rel (0) target = $region13
    $region12: #{tpu_custom_call.1} parent=1 // pred_region
      %s26 = ssub.s32 128, 128
      %27 = vsyncadd [#allocation4], %s26
      %s29 = sshll.u32 [#allocation5], 4
      %s30 = int_to_ptr.vmem [resolvable:$true] %s29
      %32 = dma.vmem_to_hbm [thread:$0]  %s30, 128, %s1, [#allocation4]
    $region13: #{tpu_custom_call.1} parent=1 // pred_fallthru
      _
    // Predicated region
    $region14: #{tpu_custom_call.1} parent=1 // pred_check
      _
    $region15: #{tpu_custom_call.1} parent=1 // pred_check_branch
      %34 = sbr.rel (0) target = $region17
    $region16: #{tpu_custom_call.1} parent=1 // pred_region
      %35 = dma.done [#allocation4], 128
    $region17: #{tpu_custom_call.1} parent=1 // pred_fallthru
      _
    %36 = vsyncpa [#allocation3], 1
    %37 = vsyncpa [#allocation4], 1

// kernel: tpu_custom_call.1
$region0: #{tpu_custom_call.1}
  #allocation0 [shape = 'u32[]', space=smem, size = 0x4, offset = 0x4, fixed_abs, tag = 'smem constant byte address 0x4 - core index']
  #allocation1 [shape = 'u32[144,128]{1,0:T(1,128)}', space=vmem, size = 0x12000, scoped, tag = 'internal scratch']
  %s0 = inlined_call_operand.hbm [shape: bf16[128,128], index: 0, kind: input, shape index: {}]
  %s1 = inlined_call_operand.hbm [shape: bf16[128,256], index: 1, kind: input, shape index: {}]
  %s2 = inlined_call_operand.vmem [shape: f32[1,256], index: 2, kind: input, shape index: {}]
  %s3 = inlined_call_operand.hbm [shape: f32[128,256], index: 3, kind: output, shape index: {}]
  %s4 = sld [smem:[#allocation0]]
  $region30: #{tpu_custom_call.1} parent=0
    _
  %s6 = ssub.s32 1, %s4
  %s7 = scalar_select 0, %s6, %s4
  $region1: #{tpu_custom_call.1} parent=0
    #allocation2 [shape = 'u8[32768]{0}', space=vmem, size = 0x8000, scoped, tag = 'input window, operand 0, single buffered']
    #allocation3 [shape = 's32[1]{0}', space=sflag, size = 0x4, scoped, tag = 'scoped memory for tpu_custom_call.1']
    #allocation4 [shape = 's32[1]{0}', space=sflag, size = 0x4, scoped, tag = 'scoped memory for tpu_custom_call.1']
    #allocation5 [shape = 'u8[65536]{0}', space=vmem, size = 0x10000, scoped, tag = 'input window, operand 1, single buffered']
    #allocation6 [shape = 's32[1]{0}', space=sflag, size = 0x4, scoped, tag = 'scoped memory for tpu_custom_call.1']
    #allocation7 [shape = 'u8[131072]{0}', space=vmem, size = 0x20000, scoped, tag = 'output window, operand 0, single buffered']
    %8 = vsyncpa [#allocation3], 0
    %9 = vsyncpa [#allocation6], 0
    %10 = vsyncpa [#allocation4], 0
    // Predicated region
    $region2: #{tpu_custom_call.1} parent=1 // pred_check
      _
    $region3: #{tpu_custom_call.1} parent=1 // pred_check_branch
      %12 = sbr.rel (0) target = $region5
    $region4: #{tpu_custom_call.1} parent=1 // pred_region
      %s14 = ssub.s32 1024, 1024
      %15 = vsyncadd [#allocation3], %s14
      %s16 = sshll.u32 [#allocation2], 4
      %s17 = int_to_ptr.vmem [resolvable:$true] %s16
      %22 = dma.hbm_to_vmem [thread:$0]  %s0, 1024, %s17, [#allocation3], 64, 64, 4
    $region5: #{tpu_custom_call.1} parent=1 // pred_fallthru
      _
    // Predicated region
    $region6: #{tpu_custom_call.1} parent=1 // pred_check
      _
    $region7: #{tpu_custom_call.1} parent=1 // pred_check_branch
      %24 = sbr.rel (0) target = $region9
    $region8: #{tpu_custom_call.1} parent=1 // pred_region
      %s26 = ssub.s32 2048, 2048
      %27 = vsyncadd [#allocation6], %s26
      %s28 = sshll.u32 [#allocation5], 4
      %s29 = int_to_ptr.vmem [resolvable:$true] %s28
      %34 = dma.hbm_to_vmem [thread:$0]  %s1, 2048, %s29, [#allocation6], 128, 128, 8
    $region9: #{tpu_custom_call.1} parent=1 // pred_fallthru
      _
    // Predicated region
    $region10: #{tpu_custom_call.1} parent=1 // pred_check
      _
    $region11: #{tpu_custom_call.1} parent=1 // pred_check_branch
      %36 = sbr.rel (0) target = $region13
    $region12: #{tpu_custom_call.1} parent=1 // pred_region
      _
    $region13: #{tpu_custom_call.1} parent=1 // pred_fallthru
      _
    // Predicated region
    $region14: #{tpu_custom_call.1} parent=1 // pred_check
      _
    $region15: #{tpu_custom_call.1} parent=1 // pred_check_branch
      %38 = sbr.rel (0) target = $region17
    $region16: #{tpu_custom_call.1} parent=1 // pred_region
      %39 = dma.done [#allocation3], 1024
    $region17: #{tpu_custom_call.1} parent=1 // pred_fallthru
      _
    // Predicated region
    $region18: #{tpu_custom_call.1} parent=1 // pred_check
      _
    $region19: #{tpu_custom_call.1} parent=1 // pred_check_branch
      %41 = sbr.rel (0) target = $region21
    $region20: #{tpu_custom_call.1} parent=1 // pred_region
      %42 = dma.done [#allocation6], 2048
    $region21: #{tpu_custom_call.1} parent=1 // pred_fallthru
      _
    %v44 = vld [vmem:[#allocation2] sm:$0xf]
    %v45 = vld [vmem:[#allocation2 + $0x4] sm:$0xf]
    %v46 = vld [vmem:[#allocation2 + $0x8] sm:$0xf]
    %v47 = vld [vmem:[#allocation2 + $0xc] sm:$0xf]
    %v48 = vld [vmem:[#allocation2 + $0x10] sm:$0xf]
    %v49 = vld [vmem:[#allocation2 + $0x14] sm:$0xf]
    %v50 = vld [vmem:[#allocation2 + $0x18] sm:$0xf]
    %v51 = vld [vmem:[#allocation2 + $0x1c] sm:$0xf]
    %v52 = vld [vmem:[#allocation2 + $0x20] sm:$0xf]
    %v53 = vld [vmem:[#allocation2 + $0x24] sm:$0xf]
    %v54 = vld [vmem:[#allocation2 + $0x28] sm:$0xf]
    %v55 = vld [vmem:[#allocation2 + $0x2c] sm:$0xf]
    %v56 = vld [vmem:[#allocation2 + $0x30] sm:$0xf]
    %v57 = vld [vmem:[#allocation2 + $0x34] sm:$0xf]
    %v58 = vld [vmem:[#allocation2 + $0x38] sm:$0xf]
    %v59 = vld [vmem:[#allocation2 + $0x3c] sm:$0xf]
    %v60 = vld [vmem:[#allocation5] sm:$0xff]
    %v61 = vld [vmem:[#allocation5 + $0x8] sm:$0xff]
    %v62 = vld [vmem:[#allocation5 + $0x10] sm:$0xff]
    %v63 = vld [vmem:[#allocation5 + $0x18] sm:$0xff]
    %v64 = vld [vmem:[#allocation5 + $0x20] sm:$0xff]
    %v65 = vld [vmem:[#allocation5 + $0x28] sm:$0xff]
    %v66 = vld [vmem:[#allocation5 + $0x30] sm:$0xff]
    %v67 = vld [vmem:[#allocation5 + $0x38] sm:$0xff]
    %v68 = vld [vmem:[#allocation5 + $0x40] sm:$0xff]
    %v69 = vld [vmem:[#allocation5 + $0x48] sm:$0xff]
    %v70 = vld [vmem:[#allocation5 + $0x50] sm:$0xff]
    %v71 = vld [vmem:[#allocation5 + $0x58] sm:$0xff]
    %v72 = vld [vmem:[#allocation5 + $0x60] sm:$0xff]
    %v73 = vld [vmem:[#allocation5 + $0x68] sm:$0xff]
    %v74 = vld [vmem:[#allocation5 + $0x70] sm:$0xff]
    %v75 = vld [vmem:[#allocation5 + $0x78] sm:$0xff]
    %v76 = vld [vmem:[%s2] sm:$0x3]
    %v78 = vlaneseq
    %v79 = vshrl.u32 %v78, 7
    %v80 = vsub.s32 0, %v79
    %v81 = vrot.slane %v76, %v80
    %v82 = vlaneseq
    %v83 = vshrl.u32 %v82, 7
    %v84 = vsub.s32 1, %v83
    %v85 = vrot.slane %v76, %v84
    %v104 = vunpack.c.l.b16 %v44
    %v105 = vunpack.c.l.b16 %v45
    %v106 = vunpack.c.l.b16 %v46
    %v107 = vunpack.c.l.b16 %v47
    %v108 = vunpack.c.l.b16 %v48
    %v109 = vunpack.c.l.b16 %v49
    %v110 = vunpack.c.l.b16 %v50
    %v111 = vunpack.c.l.b16 %v51
    %v112 = vunpack.c.l.b16 %v52
    %v113 = vunpack.c.l.b16 %v53
    %v114 = vunpack.c.l.b16 %v54
    %v115 = vunpack.c.l.b16 %v55
    %v116 = vunpack.c.l.b16 %v56
    %v117 = vunpack.c.l.b16 %v57
    %v118 = vunpack.c.l.b16 %v58
    %v119 = vunpack.c.l.b16 %v59
    %v120 = vpack.c.b16 %v105, %v104
    %v121 = vpack.c.b16 %v107, %v106
    %v122 = vpack.c.b16 %v109, %v108
    %v123 = vpack.c.b16 %v111, %v110
    %v124 = vpack.c.b16 %v113, %v112
    %v125 = vpack.c.b16 %v115, %v114
    %v126 = vpack.c.b16 %v117, %v116
    %v127 = vpack.c.b16 %v119, %v118
    %v152 = vunpack.c.l.b16 %v60
    %v153 = vunpack.c.h.b16 %v60
    %v154 = vunpack.c.l.b16 %v61
    %v155 = vunpack.c.h.b16 %v61
    %v156 = vunpack.c.l.b16 %v62
    %v157 = vunpack.c.h.b16 %v62
    %v158 = vunpack.c.l.b16 %v63
    %v159 = vunpack.c.h.b16 %v63
    %v160 = vunpack.c.l.b16 %v64
    %v161 = vunpack.c.h.b16 %v64
    %v162 = vunpack.c.l.b16 %v65
    %v163 = vunpack.c.h.b16 %v65
    %v164 = vunpack.c.l.b16 %v66
    %v165 = vunpack.c.h.b16 %v66
    %v166 = vunpack.c.l.b16 %v67
    %v167 = vunpack.c.h.b16 %v67
    %v168 = vunpack.c.l.b16 %v68
    %v169 = vunpack.c.h.b16 %v68
    %v170 = vunpack.c.l.b16 %v69
    %v171 = vunpack.c.h.b16 %v69
    %v172 = vunpack.c.l.b16 %v70
    %v173 = vunpack.c.h.b16 %v70
    %v174 = vunpack.c.l.b16 %v71
    %v175 = vunpack.c.h.b16 %v71
    %v176 = vunpack.c.l.b16 %v72
    %v177 = vunpack.c.h.b16 %v72
    %v178 = vunpack.c.l.b16 %v73
    %v179 = vunpack.c.h.b16 %v73
    %v180 = vunpack.c.l.b16 %v74
    %v181 = vunpack.c.h.b16 %v74
    %v182 = vunpack.c.l.b16 %v75
    %v183 = vunpack.c.h.b16 %v75
    %v184 = vpack.c.b16 %v154, %v152
    %v185 = vpack.c.b16 %v155, %v153
    %v186 = vpack.c.b16 %v158, %v156
    %v187 = vpack.c.b16 %v159, %v157
    %v188 = vpack.c.b16 %v162, %v160
    %v189 = vpack.c.b16 %v163, %v161
    %v190 = vpack.c.b16 %v166, %v164
    %v191 = vpack.c.b16 %v167, %v165
    %v192 = vpack.c.b16 %v170, %v168
    %v193 = vpack.c.b16 %v171, %v169
    %v194 = vpack.c.b16 %v174, %v172
    %v195 = vpack.c.b16 %v175, %v173
    %v196 = vpack.c.b16 %v178, %v176
    %v197 = vpack.c.b16 %v179, %v177
    %v198 = vpack.c.b16 %v182, %v180
    %v199 = vpack.c.b16 %v183, %v181
    %216 = vmatprep.subr.bf16.mxu0 %v185
    %217 = vmatpush1.bf16.msra.mxu0 %v184
    %218 = vmatprep.subr.bf16.mxu0 %v187
    %219 = vmatpush1.bf16.msra.mxu0 %v186
    %220 = vmatprep.subr.bf16.mxu0 %v189
    %221 = vmatpush1.bf16.msra.mxu0 %v188
    %222 = vmatprep.subr.bf16.mxu0 %v191
    %223 = vmatpush1.bf16.msra.mxu0 %v190
    %224 = vmatprep.subr.bf16.mxu0 %v193
    %225 = vmatpush1.bf16.msra.mxu0 %v192
    %226 = vmatprep.subr.bf16.mxu0 %v195
    %227 = vmatpush1.bf16.msra.mxu0 %v194
    %228 = vmatprep.subr.bf16.mxu0 %v197
    %229 = vmatpush1.bf16.msra.mxu0 %v196
    %230 = vmatprep.subr.bf16.mxu0 %v199
    %231 = vmatpush1.bf16.msra.mxu0 %v198
    %232 = vmatprep.subr.bf16.mxu0 0
    %233 = vmatpush1.bf16.msra.mxu0 0
    %234 = vmatprep.subr.bf16.mxu0 0
    %235 = vmatpush1.bf16.msra.mxu0 0
    %236 = vmatprep.subr.bf16.mxu0 0
    %237 = vmatpush1.bf16.msra.mxu0 0
    %238 = vmatprep.subr.bf16.mxu0 0
    %239 = vmatpush1.bf16.msra.mxu0 0
    %240 = vmatprep.subr.bf16.mxu0 0
    %241 = vmatpush1.bf16.msra.mxu0 0
    %242 = vmatprep.subr.bf16.mxu0 0
    %243 = vmatpush1.bf16.msra.mxu0 0
    %244 = vmatprep.subr.bf16.mxu0 0
    %245 = vmatpush1.bf16.msra.mxu0 0
    %246 = vmatprep.subr.bf16.mxu0 0
    %247 = vmatpush1.bf16.msra.mxu0 0
    %248 = vmatprep.mubr.bf16.mxu0 0
    %249 = vmatmul.mubr.bf16.gmra.mrb[0].mxu0 %v120
    %v250 = vpop.f32.mrb[0].mxu0
    %v251 = vadd.f32 %v81, %v250
    %v252 = vpop.f32.mrb[0].mxu0
    %v253 = vadd.f32 %v85, %v252
    %v254 = vpop.f32.mrb[0].mxu0
    %v255 = vadd.f32 %v81, %v254
    %v256 = vpop.f32.mrb[0].mxu0
    %v257 = vadd.f32 %v85, %v256
    %258 = vmatprep.mubr.bf16.mxu0 0
    %259 = vmatmul.mubr.bf16.gmra.mrb[0].mxu0 %v121
    %v260 = vpop.f32.mrb[0].mxu0
    %v261 = vadd.f32 %v81, %v260
    %v262 = vpop.f32.mrb[0].mxu0
    %v263 = vadd.f32 %v85, %v262
    %v264 = vpop.f32.mrb[0].mxu0
    %v265 = vadd.f32 %v81, %v264
    %v266 = vpop.f32.mrb[0].mxu0
    %v267 = vadd.f32 %v85, %v266
    %268 = vmatprep.mubr.bf16.mxu0 0
    %269 = vmatmul.mubr.bf16.gmra.mrb[0].mxu0 %v122
    %v270 = vpop.f32.mrb[0].mxu0
    %v271 = vadd.f32 %v81, %v270
    %v272 = vpop.f32.mrb[0].mxu0
    %v273 = vadd.f32 %v85, %v272
    %v274 = vpop.f32.mrb[0].mxu0
    %v275 = vadd.f32 %v81, %v274
    %v276 = vpop.f32.mrb[0].mxu0
    %v277 = vadd.f32 %v85, %v276
    %278 = vmatprep.mubr.bf16.mxu0 0
    %279 = vmatmul.mubr.bf16.gmra.mrb[0].mxu0 %v123
    %v280 = vpop.f32.mrb[0].mxu0
    %v281 = vadd.f32 %v81, %v280
    %v282 = vpop.f32.mrb[0].mxu0
    %v283 = vadd.f32 %v85, %v282
    %v284 = vpop.f32.mrb[0].mxu0
    %v285 = vadd.f32 %v81, %v284
    %v286 = vpop.f32.mrb[0].mxu0
    %v287 = vadd.f32 %v85, %v286
    %288 = vmatprep.mubr.bf16.mxu0 0
    %289 = vmatmul.mubr.bf16.gmra.mrb[0].mxu0 %v124
    %v290 = vpop.f32.mrb[0].mxu0
    %v291 = vadd.f32 %v81, %v290
    %v292 = vpop.f32.mrb[0].mxu0
    %v293 = vadd.f32 %v85, %v292
    %v294 = vpop.f32.mrb[0].mxu0
    %v295 = vadd.f32 %v81, %v294
    %v296 = vpop.f32.mrb[0].mxu0
    %v297 = vadd.f32 %v85, %v296
    %298 = vmatprep.mubr.bf16.mxu0 0
    %299 = vmatmul.mubr.bf16.gmra.mrb[0].mxu0 %v125
    %v300 = vpop.f32.mrb[0].mxu0
    %v301 = vadd.f32 %v81, %v300
    %v302 = vpop.f32.mrb[0].mxu0
    %v303 = vadd.f32 %v85, %v302
    %v304 = vpop.f32.mrb[0].mxu0
    %v305 = vadd.f32 %v81, %v304
    %v306 = vpop.f32.mrb[0].mxu0
    %v307 = vadd.f32 %v85, %v306
    %308 = vmatprep.mubr.bf16.mxu0 0
    %309 = vmatmul.mubr.bf16.gmra.mrb[0].mxu0 %v126
    %v310 = vpop.f32.mrb[0].mxu0
    %v311 = vadd.f32 %v81, %v310
    %v312 = vpop.f32.mrb[0].mxu0
    %v313 = vadd.f32 %v85, %v312
    %v314 = vpop.f32.mrb[0].mxu0
    %v315 = vadd.f32 %v81, %v314
    %v316 = vpop.f32.mrb[0].mxu0
    %v317 = vadd.f32 %v85, %v316
    %318 = vmatprep.mubr.bf16.mxu0 0
    %319 = vmatmul.mubr.bf16.gmra.mrb[0].mxu0 %v127
    %v320 = vpop.f32.mrb[0].mxu0
    %v321 = vadd.f32 %v81, %v320
    %v322 = vpop.f32.mrb[0].mxu0
    %v323 = vadd.f32 %v85, %v322
    %v324 = vpop.f32.mrb[0].mxu0
    %v325 = vadd.f32 %v81, %v324
    %v326 = vpop.f32.mrb[0].mxu0
    %v327 = vadd.f32 %v85, %v326
    %328 = vdwg.mxu0
    %v329 = vmax.f32 %v251, 0.0
    %v330 = vmax.f32 %v253, 0.0
    %v331 = vmax.f32 %v255, 0.0
    %v332 = vmax.f32 %v257, 0.0
    %v333 = vmax.f32 %v261, 0.0
    %v334 = vmax.f32 %v263, 0.0
    %v335 = vmax.f32 %v265, 0.0
    %v336 = vmax.f32 %v267, 0.0
    %v337 = vmax.f32 %v271, 0.0
    %v338 = vmax.f32 %v273, 0.0
    %v339 = vmax.f32 %v275, 0.0
    %v340 = vmax.f32 %v277, 0.0
    %v341 = vmax.f32 %v281, 0.0
    %v342 = vmax.f32 %v283, 0.0
    %v343 = vmax.f32 %v285, 0.0
    %v344 = vmax.f32 %v287, 0.0
    %v345 = vmax.f32 %v291, 0.0
    %v346 = vmax.f32 %v293, 0.0
    %v347 = vmax.f32 %v295, 0.0
    %v348 = vmax.f32 %v297, 0.0
    %v349 = vmax.f32 %v301, 0.0
    %v350 = vmax.f32 %v303, 0.0
    %v351 = vmax.f32 %v305, 0.0
    %v352 = vmax.f32 %v307, 0.0
    %v353 = vmax.f32 %v311, 0.0
    %v354 = vmax.f32 %v313, 0.0
    %v355 = vmax.f32 %v315, 0.0
    %v356 = vmax.f32 %v317, 0.0
    %v357 = vmax.f32 %v321, 0.0
    %v358 = vmax.f32 %v323, 0.0
    %v359 = vmax.f32 %v325, 0.0
    %v360 = vmax.f32 %v327, 0.0
    %361 = vst [vmem:[#allocation7] sm:$0xff] %v329
    %362 = vst [vmem:[#allocation7 + $0x8] sm:$0xff] %v330
    %363 = vst [vmem:[#allocation7 + $0x10] sm:$0xff] %v331
    %364 = vst [vmem:[#allocation7 + $0x18] sm:$0xff] %v332
    %365 = vst [vmem:[#allocation7 + $0x20] sm:$0xff] %v333
    %366 = vst [vmem:[#allocation7 + $0x28] sm:$0xff] %v334
    %367 = vst [vmem:[#allocation7 + $0x30] sm:$0xff] %v335
    %368 = vst [vmem:[#allocation7 + $0x38] sm:$0xff] %v336
    %369 = vst [vmem:[#allocation7 + $0x40] sm:$0xff] %v337
    %370 = vst [vmem:[#allocation7 + $0x48] sm:$0xff] %v338
    %371 = vst [vmem:[#allocation7 + $0x50] sm:$0xff] %v339
    %372 = vst [vmem:[#allocation7 + $0x58] sm:$0xff] %v340
    %373 = vst [vmem:[#allocation7 + $0x60] sm:$0xff] %v341
    %374 = vst [vmem:[#allocation7 + $0x68] sm:$0xff] %v342
    %375 = vst [vmem:[#allocation7 + $0x70] sm:$0xff] %v343
    %376 = vst [vmem:[#allocation7 + $0x78] sm:$0xff] %v344
    %377 = vst [vmem:[#allocation7 + $0x80] sm:$0xff] %v345
    %378 = vst [vmem:[#allocation7 + $0x88] sm:$0xff] %v346
    %379 = vst [vmem:[#allocation7 + $0x90] sm:$0xff] %v347
    %380 = vst [vmem:[#allocation7 + $0x98] sm:$0xff] %v348
    %381 = vst [vmem:[#allocation7 + $0xa0] sm:$0xff] %v349
    %382 = vst [vmem:[#allocation7 + $0xa8] sm:$0xff] %v350
    %383 = vst [vmem:[#allocation7 + $0xb0] sm:$0xff] %v351
    %384 = vst [vmem:[#allocation7 + $0xb8] sm:$0xff] %v352
    %385 = vst [vmem:[#allocation7 + $0xc0] sm:$0xff] %v353
    %386 = vst [vmem:[#allocation7 + $0xc8] sm:$0xff] %v354
    %387 = vst [vmem:[#allocation7 + $0xd0] sm:$0xff] %v355
    %388 = vst [vmem:[#allocation7 + $0xd8] sm:$0xff] %v356
    %389 = vst [vmem:[#allocation7 + $0xe0] sm:$0xff] %v357
    %390 = vst [vmem:[#allocation7 + $0xe8] sm:$0xff] %v358
    %391 = vst [vmem:[#allocation7 + $0xf0] sm:$0xff] %v359
    %392 = vst [vmem:[#allocation7 + $0xf8] sm:$0xff] %v360
    // Predicated region
    $region22: #{tpu_custom_call.1} parent=1 // pred_check
      _
    $region23: #{tpu_custom_call.1} parent=1 // pred_check_branch
      %394 = sbr.rel (0) target = $region25
    $region24: #{tpu_custom_call.1} parent=1 // pred_region
      %s396 = ssub.s32 4096, 4096
      %397 = vsyncadd [#allocation4], %s396
      %s398 = sshll.u32 [#allocation7], 4
      %s399 = int_to_ptr.vmem [resolvable:$true] %s398
      %404 = dma.vmem_to_hbm [thread:$0]  %s399, 4096, %s3, [#allocation4], 256, 256, 16
    $region25: #{tpu_custom_call.1} parent=1 // pred_fallthru
      _
    // Predicated region
    $region26: #{tpu_custom_call.1} parent=1 // pred_check
      _
    $region27: #{tpu_custom_call.1} parent=1 // pred_check_branch
      %406 = sbr.rel (0) target = $region29
    $region28: #{tpu_custom_call.1} parent=1 // pred_region
      %407 = dma.done [#allocation4], 4096
    $region29: #{tpu_custom_call.1} parent=1 // pred_fallthru
      _
    %408 = vsyncpa [#allocation3], 1
    %409 = vsyncpa [#allocation6], 1
    %410 = vsyncpa [#allocation4], 1

</llo_original>
